<compile_context>
chip_gen: v5e
topology: v5e:2x2
jax: 0.10.0
libtpu: 0.0.40
codegen_flags: <defaults>
</compile_context>

<pallas_src>
import functools

import jax
import jax.numpy as jnp
from jax import lax
from jax.experimental import pallas as pl
from jax.experimental.pallas import tpu as pltpu

# >= v5e's 16 MiB default scoped limit, == v6e/v7x defaults (safe on 64 MiB v7x VMEM).
_VMEM_LIMIT_BYTES = 32 * 1024 * 1024


def _pick_hw_tile(hw, c, itemsize, target_bytes=2 * 1024 * 1024):
    """Largest lane tile t such that C*t*itemsize <= target, t divides hw,
    and t is a multiple of 128 (or the full extent)."""
    cap = max(128, target_bytes // max(1, c * itemsize))
    if hw <= cap:
        return hw
    t = (min(cap, hw) // 128) * 128
    while t >= 128:
        if hw % t == 0:
            return t
        t -= 128
    return hw  # fallback: full extent (always legal; must fit the VMEM budget)


# ----------------------------- Kernel 1: per-channel sum / centered sum-of-squares ---------
def _stats_kernel(x_ref, c_ref, sum_ref, csq_ref, acc_sum, acc_csq):
    j = pl.program_id(1)

    @pl.when(j == 0)
    def _():
        acc_sum[...] = jnp.zeros_like(acc_sum)
        acc_csq[...] = jnp.zeros_like(acc_csq)

    x = x_ref[...].astype(jnp.float32)       # (1, C, t_hw)
    xc = x - c_ref[...]                      # center by running_mean (cancellation guard)
    acc_sum[...] += x                        # pure VPU adds; lane reduction deferred
    acc_csq[...] += xc * xc

    @pl.when(j == pl.num_programs(1) - 1)
    def _():
        sum_ref[...] = jnp.sum(acc_sum[...], axis=-1, keepdims=True)   # (1, C, 1)
        csq_ref[...] = jnp.sum(acc_csq[...], axis=-1, keepdims=True)


# ----------------------------- Kernel 2: scale/shift + activation (in place) ---------------
def _norm_act_kernel(x_ref, scale_ref, shift_ref, o_ref, *, activation, slope):
    x = x_ref[...].astype(jnp.float32)                    # (1, C, t_hw)
    y = x * scale_ref[...] + shift_ref[...]               # (1, C, 1) broadcast over lanes
    if activation == "leaky_relu":
        y = jnp.where(y >= 0.0, y, slope * y)
    elif activation == "elu":
        y = jnp.where(y >= 0.0, y, jnp.expm1(y))
    # "none": passthrough
    o_ref[...] = y.astype(o_ref.dtype)


# ----------------------------- Wrapper ------------------------------------------------------
def inplace_abn_sync_forward(x, weight, bias, running_mean, running_var,
                             eps=1e-5, momentum=0.1, activation="leaky_relu",
                             slope=0.01, target_tile_bytes=2 * 1024 * 1024):
    """Forward of InPlaceABNSync in training mode on a single device.

    Returns (y, new_running_mean, new_running_var) with y in NCHW like PyTorch.
    """
    assert activation in ("leaky_relu", "elu", "none")
    N, C, H, W = x.shape
    HW = H * W
    itemsize = jnp.dtype(x.dtype).itemsize
    t_hw = _pick_hw_tile(HW, C, itemsize, target_tile_bytes)
    n_hw = HW // t_hw

    x3 = x.reshape(N, C, HW)                         # free contiguous reshape of NCHW
    rm_f = running_mean.astype(jnp.float32)
    rv_f = running_var.astype(jnp.float32)
    rm3 = rm_f.reshape(1, C, 1)

    # --- pass 1: per-(batch, channel) partial sums; batch axis parallel, spatial reduction ---
    psum, pcsq = pl.pallas_call(
        _stats_kernel,
        out_shape=(jax.ShapeDtypeStruct((N, C, 1), jnp.float32),
                   jax.ShapeDtypeStruct((N, C, 1), jnp.float32)),
        grid_spec=pltpu.PrefetchScalarGridSpec(
            num_scalar_prefetch=0,
            grid=(N, n_hw),
            in_specs=[pl.BlockSpec((1, C, t_hw), lambda n, j: (n, 0, j)),
                      pl.BlockSpec((1, C, 1), lambda n, j: (0, 0, 0))],
            out_specs=[pl.BlockSpec((1, C, 1), lambda n, j: (n, 0, 0)),
                       pl.BlockSpec((1, C, 1), lambda n, j: (n, 0, 0))],
            scratch_shapes=[pltpu.VMEM((1, C, t_hw), jnp.float32),
                            pltpu.VMEM((1, C, t_hw), jnp.float32)],
        ),
        compiler_params=pltpu.CompilerParams(
            dimension_semantics=("parallel", "arbitrary"),
            vmem_limit_bytes=_VMEM_LIMIT_BYTES),
        cost_estimate=pl.CostEstimate(
            flops=4 * N * C * HW,
            transcendentals=0,
            bytes_accessed=N * C * HW * itemsize + 2 * N * C * 4 + C * 4),
    )(x3, rm3)

    count = jnp.float32(N * HW)
    sums = jnp.sum(psum, axis=0).reshape(C)          # tiny (N, C) -> (C,) combine in XLA
    csqs = jnp.sum(pcsq, axis=0).reshape(C)
    mean = sums / count
    var = jnp.maximum(csqs / count - (mean - rm_f) ** 2, 0.0)   # biased, used for output

    w_f = (jnp.ones((C,), jnp.float32) if weight is None else weight.astype(jnp.float32))
    b_f = (jnp.zeros((C,), jnp.float32) if bias is None else bias.astype(jnp.float32))
    inv_std = lax.rsqrt(var + jnp.float32(eps))
    scale_c = w_f * inv_std
    shift_c = b_f - mean * scale_c
    scale3 = scale_c.reshape(1, C, 1)
    shift3 = shift_c.reshape(1, C, 1)

    # --- pass 2: elementwise normalize + activation, output aliased onto the input slab ---
    kern = functools.partial(_norm_act_kernel, activation=activation, slope=float(slope))
    y3 = pl.pallas_call(
        kern,
        out_shape=jax.ShapeDtypeStruct((N, C, HW), x.dtype),
        grid_spec=pltpu.PrefetchScalarGridSpec(
            num_scalar_prefetch=0,
            grid=(N, n_hw),
            in_specs=[pl.BlockSpec((1, C, t_hw), lambda n, j: (n, 0, j)),
                      pl.BlockSpec((1, C, 1), lambda n, j: (0, 0, 0)),
                      pl.BlockSpec((1, C, 1), lambda n, j: (0, 0, 0))],
            out_specs=pl.BlockSpec((1, C, t_hw), lambda n, j: (n, 0, j)),
        ),
        compiler_params=pltpu.CompilerParams(
            dimension_semantics=("parallel", "parallel"),
            vmem_limit_bytes=_VMEM_LIMIT_BYTES),
        cost_estimate=pl.CostEstimate(
            flops=4 * N * C * HW,
            transcendentals=0,
            bytes_accessed=2 * N * C * HW * itemsize + 2 * C * 4),
        input_output_aliases={0: 0},                  # in-place, as in InPlaceABN
    )(x3, scale3, shift3)

    y = y3.reshape(N, C, H, W)                        # free reshape back to NCHW

    # running-stat update (tiny per-channel glue; PyTorch uses the unbiased variance)
    denom = jnp.maximum(count - 1.0, 1.0)
    var_unbiased = var * (count / denom)
    m = jnp.float32(momentum)
    new_running_mean = (1.0 - m) * rm_f + m * mean
    new_running_var = (1.0 - m) * rv_f + m * var_unbiased

    return y, new_running_mean, new_running_var


# ----------------------------- Reference (plain JAX) for sanity -----------------------------
def _reference(x, weight, bias, eps, slope):
    mean = jnp.mean(x, axis=(0, 2, 3), keepdims=True)
    var = jnp.var(x, axis=(0, 2, 3), keepdims=True)
    y = (x - mean) * lax.rsqrt(var + eps) * weight.reshape(1, -1, 1, 1) + bias.reshape(1, -1, 1, 1)
    return jnp.where(y >= 0.0, y, slope * y)


if __name__ == "__main__":
    key = jax.random.PRNGKey(0)
    N, C, H, W = 2, 4, 16, 16
    x = jax.random.normal(key, (N, C, H, W), dtype=jnp.float32)

    # deterministic parameter init, matching reset_parameters()
    weight = jnp.ones((C,), jnp.float32)
    bias = jnp.zeros((C,), jnp.float32)
    running_mean = jnp.zeros((C,), jnp.float32)
    running_var = jnp.ones((C,), jnp.float32)

    y_ref = _reference(x, weight, bias, 1e-5, 0.01)

    y, rm, rv = inplace_abn_sync_forward(
        x, weight, bias, running_mean, running_var,
        eps=1e-5, momentum=0.1, activation="leaky_relu", slope=0.01)
    jax.block_until_ready((y, rm, rv))

    assert y.shape == x.shape
    assert jnp.allclose(y, y_ref, atol=1e-4, rtol=1e-4), "output mismatch vs reference"

    cnt = float(N * H * W)
    mean_ref = jnp.mean(x, axis=(0, 2, 3))
    var_ref = jnp.var(x, axis=(0, 2, 3))
    rm_ref = 0.9 * running_mean + 0.1 * mean_ref
    rv_ref = 0.9 * running_var + 0.1 * var_ref * (cnt / (cnt - 1.0))
    assert jnp.allclose(rm, rm_ref, atol=1e-4, rtol=1e-4), "running_mean mismatch"
    assert jnp.allclose(rv, rv_ref, atol=1e-4, rtol=1e-4), "running_var mismatch"

    print("KERNEL_OK")
</pallas_src>

<mosaic_0001>
module attributes {stable_mosaic.version = 11 : i64} {
  func.func @_stats_kernel(%arg0: i32, %arg1: i32, %arg2: memref<1x4x256xf32, #tpu.memory_space<vmem>>, %arg3: memref<1x4x1xf32, #tpu.memory_space<vmem>>, %arg4: memref<1x4x1xf32, #tpu.memory_space<vmem>>, %arg5: memref<1x4x1xf32, #tpu.memory_space<vmem>>, %arg6: memref<1x4x256xf32, #tpu.memory_space<vmem>>, %arg7: memref<1x4x256xf32, #tpu.memory_space<vmem>>) attributes {dimension_semantics = [#tpu.dimension_semantics<parallel>, #tpu.dimension_semantics<arbitrary>], iteration_bounds = array<i64: 2, 1>, scalar_prefetch = 0 : i64, scratch_operands = 2 : i64, tpu.core_type = #tpu.core_type<tc>, window_params = [{transform_indices = @transform_0, window_bounds = array<i64: 1, 4, 256>}, {pipeline_mode = #tpu.pipeline_mode<synchronous>, transform_indices = @transform_1, window_bounds = array<i64: 1, 4, 1>}, {transform_indices = @transform_2, window_bounds = array<i64: 1, 4, 1>}, {transform_indices = @transform_3, window_bounds = array<i64: 1, 4, 1>}]} {
    %c0_i32 = arith.constant 0 : i32
    %0 = arith.cmpi eq, %arg1, %c0_i32 : i32
    %1 = arith.extui %0 : i1 to i32
    %c0_i32_0 = arith.constant 0 : i32
    %2 = arith.cmpi ne, %1, %c0_i32_0 : i32
    scf.if %2 {
      %cst = arith.constant 0.000000e+00 : f32
      %17 = vector.broadcast %cst : f32 to vector<1x4x256xf32>
      %c0_20 = arith.constant 0 : index
      %c0_21 = arith.constant 0 : index
      %c0_22 = arith.constant 0 : index
      %18 = vector.load %arg6[%c0_20, %c0_21, %c0_22] : memref<1x4x256xf32, #tpu.memory_space<vmem>>, vector<1x4x256xf32>
      tpu.vector_store %arg6[%c0_20, %c0_21, %c0_22], %17 {strides = array<i32>} : memref<1x4x256xf32, #tpu.memory_space<vmem>>, vector<1x4x256xf32>,
      %cst_23 = arith.constant 0.000000e+00 : f32
      %19 = vector.broadcast %cst_23 : f32 to vector<1x4x256xf32>
      %c0_24 = arith.constant 0 : index
      %c0_25 = arith.constant 0 : index
      %c0_26 = arith.constant 0 : index
      %20 = vector.load %arg7[%c0_24, %c0_25, %c0_26] : memref<1x4x256xf32, #tpu.memory_space<vmem>>, vector<1x4x256xf32>
      tpu.vector_store %arg7[%c0_24, %c0_25, %c0_26], %19 {strides = array<i32>} : memref<1x4x256xf32, #tpu.memory_space<vmem>>, vector<1x4x256xf32>,
    } else {
    }
    %c0 = arith.constant 0 : index
    %c0_1 = arith.constant 0 : index
    %c0_2 = arith.constant 0 : index
    %3 = vector.load %arg2[%c0, %c0_1, %c0_2] : memref<1x4x256xf32, #tpu.memory_space<vmem>>, vector<1x4x256xf32>
    %c0_3 = arith.constant 0 : index
    %c0_4 = arith.constant 0 : index
    %c0_5 = arith.constant 0 : index
    %4 = vector.load %arg3[%c0_3, %c0_4, %c0_5] : memref<1x4x1xf32, #tpu.memory_space<vmem>>, vector<1x4x1xf32>
    %5 = vector.broadcast %4 : vector<1x4x1xf32> to vector<1x4x256xf32>
    %6 = arith.subf %3, %5 : vector<1x4x256xf32>
    %c0_6 = arith.constant 0 : index
    %c0_7 = arith.constant 0 : index
    %c0_8 = arith.constant 0 : index
    %7 = vector.load %arg6[%c0_6, %c0_7, %c0_8] : memref<1x4x256xf32, #tpu.memory_space<vmem>>, vector<1x4x256xf32>
    %8 = arith.addf %7, %3 : vector<1x4x256xf32>
    %c0_9 = arith.constant 0 : index
    %c0_10 = arith.constant 0 : index
    %c0_11 = arith.constant 0 : index
    %9 = vector.load %arg6[%c0_9, %c0_10, %c0_11] : memref<1x4x256xf32, #tpu.memory_space<vmem>>, vector<1x4x256xf32>
    tpu.vector_store %arg6[%c0_9, %c0_10, %c0_11], %8 {strides = array<i32>} : memref<1x4x256xf32, #tpu.memory_space<vmem>>, vector<1x4x256xf32>,
    %c0_12 = arith.constant 0 : index
    %c0_13 = arith.constant 0 : index
    %c0_14 = arith.constant 0 : index
    %10 = vector.load %arg7[%c0_12, %c0_13, %c0_14] : memref<1x4x256xf32, #tpu.memory_space<vmem>>, vector<1x4x256xf32>
    %11 = arith.mulf %6, %6 : vector<1x4x256xf32>
    %12 = arith.addf %10, %11 : vector<1x4x256xf32>
    %c0_15 = arith.constant 0 : index
    %c0_16 = arith.constant 0 : index
    %c0_17 = arith.constant 0 : index
    %13 = vector.load %arg7[%c0_15, %c0_16, %c0_17] : memref<1x4x256xf32, #tpu.memory_space<vmem>>, vector<1x4x256xf32>
    tpu.vector_store %arg7[%c0_15, %c0_16, %c0_17], %12 {strides = array<i32>} : memref<1x4x256xf32, #tpu.memory_space<vmem>>, vector<1x4x256xf32>,
    %c0_i32_18 = arith.constant 0 : i32
    %14 = arith.cmpi eq, %arg1, %c0_i32_18 : i32
    %15 = arith.extui %14 : i1 to i32
    %c0_i32_19 = arith.constant 0 : i32
    %16 = arith.cmpi ne, %15, %c0_i32_19 : i32
    scf.if %16 {
      %c0_20 = arith.constant 0 : index
      %c0_21 = arith.constant 0 : index
      %c0_22 = arith.constant 0 : index
      %17 = vector.load %arg6[%c0_20, %c0_21, %c0_22] : memref<1x4x256xf32, #tpu.memory_space<vmem>>, vector<1x4x256xf32>
      %cst = arith.constant dense<0.000000e+00> : vector<1x4xf32>
      %18 = vector.multi_reduction <add>, %17, %cst [2] : vector<1x4x256xf32> to vector<1x4xf32>
      %19 = vector.shape_cast %18 : vector<1x4xf32> to vector<1x4x1xf32>
      %c0_23 = arith.constant 0 : index
      %c0_24 = arith.constant 0 : index
      %c0_25 = arith.constant 0 : index
      %20 = vector.load %arg4[%c0_23, %c0_24, %c0_25] : memref<1x4x1xf32, #tpu.memory_space<vmem>>, vector<1x4x1xf32>
      tpu.vector_store %arg4[%c0_23, %c0_24, %c0_25], %19 {strides = array<i32>} : memref<1x4x1xf32, #tpu.memory_space<vmem>>, vector<1x4x1xf32>,
      %c0_26 = arith.constant 0 : index
      %c0_27 = arith.constant 0 : index
      %c0_28 = arith.constant 0 : index
      %21 = vector.load %arg7[%c0_26, %c0_27, %c0_28] : memref<1x4x256xf32, #tpu.memory_space<vmem>>, vector<1x4x256xf32>
      %cst_29 = arith.constant dense<0.000000e+00> : vector<1x4xf32>
      %22 = vector.multi_reduction <add>, %21, %cst_29 [2] : vector<1x4x256xf32> to vector<1x4xf32>
      %23 = vector.shape_cast %22 : vector<1x4xf32> to vector<1x4x1xf32>
      %c0_30 = arith.constant 0 : index
      %c0_31 = arith.constant 0 : index
      %c0_32 = arith.constant 0 : index
      %24 = vector.load %arg5[%c0_30, %c0_31, %c0_32] : memref<1x4x1xf32, #tpu.memory_space<vmem>>, vector<1x4x1xf32>
      tpu.vector_store %arg5[%c0_30, %c0_31, %c0_32], %23 {strides = array<i32>} : memref<1x4x1xf32, #tpu.memory_space<vmem>>, vector<1x4x1xf32>,
    } else {
    }
    return
  }
  func.func @transform_0(%arg0: i32, %arg1: i32) -> (i32, i32, i32) {
    %c0_i32 = arith.constant 0 : i32
    %c0_i32_0 = arith.constant 0 : i32
    return %arg0, %c0_i32, %arg1 : i32, i32, i32
  }
  func.func @transform_1(%arg0: i32, %arg1: i32) -> (i32, i32, i32) {
    %c0_i32 = arith.constant 0 : i32
    %c0_i32_0 = arith.constant 0 : i32
    %c0_i32_1 = arith.constant 0 : i32
    %c0_i32_2 = arith.constant 0 : i32
    return %c0_i32, %c0_i32_0, %c0_i32_1 : i32, i32, i32
  }
  func.func @transform_2(%arg0: i32, %arg1: i32) -> (i32, i32, i32) {
    %c0_i32 = arith.constant 0 : i32
    %c0_i32_0 = arith.constant 0 : i32
    %c0_i32_1 = arith.constant 0 : i32
    return %arg0, %c0_i32, %c0_i32_0 : i32, i32, i32
  }
  func.func @transform_3(%arg0: i32, %arg1: i32) -> (i32, i32, i32) {
    %c0_i32 = arith.constant 0 : i32
    %c0_i32_0 = arith.constant 0 : i32
    %c0_i32_1 = arith.constant 0 : i32
    return %arg0, %c0_i32, %c0_i32_0 : i32, i32, i32
  }
}

</mosaic_0001>

<llo_original>
// kernel: tpu_custom_call.1
$region0: #{tpu_custom_call.1}
  #allocation0 [shape = 'u32[]', space=smem, size = 0x4, offset = 0x4, fixed_abs, tag = 'smem constant byte address 0x4 - core index']
  #allocation1 [shape = 'u32[72,128]{1,0:T(1,128)}', space=vmem, size = 0x9000, scoped, tag = 'internal scratch']
  #allocation2 [shape = 'f32[1,4,256]{2,1,0:T(4,128)}', space=vmem, size = 0x1000, scoped, tag = 'scratch operand']
  #allocation3 [shape = 'f32[1,4,256]{2,1,0:T(4,128)}', space=vmem, size = 0x1000, scoped, tag = 'scratch operand']
  %s0 = inlined_call_operand.hbm [shape: f32[2,4,256], index: 0, kind: input, shape index: {}]
  %s1 = inlined_call_operand.vmem [shape: f32[1,4,1], index: 1, kind: input, shape index: {}]
  %s2 = inlined_call_operand.vmem [shape: f32[2,4,1], index: 2, kind: output, shape index: {0}]
  %s3 = inlined_call_operand.vmem [shape: f32[2,4,1], index: 3, kind: output, shape index: {1}]
  %4 = xla_tuple %s2, %s3
  %s5 = sld [smem:[#allocation0]]
  $region61: #{tpu_custom_call.1} parent=0
    _
  %s7 = ssub.s32 1, %s5
  %s8 = scalar_select 0, %s7, %s5
  $region1: #{tpu_custom_call.1} parent=0
    #allocation4 [shape = 'u8[8192]{0}', space=vmem, size = 0x2000, scoped, tag = 'input window, operand 0']
    #allocation5 [shape = 's32[2]{0}', space=sflag, size = 0x8, scoped, tag = 'scoped memory for tpu_custom_call.1']
    %9 = vsyncpa [#allocation5], 0
    %s10 = scalar_lea.sflag [#allocation5], 1
    %11 = vsyncpa %s10, 0
    loop: start=0, step=1, limit=4
    $region2: #{tpu_custom_call.1} parent=1 // loop_pre_header
      _
    $region3: #{tpu_custom_call.1} parent=1 // loop_header
      %s13 = sphi 0, %s17
      %p14 = scmp.ge.s32.totalorder %s13, 4
      %s20 = sphi 0, %s32
      %s21 = sphi 0, %s28
      %s22 = sphi 0, %s20
      %s23 = sphi 0, %s21
      %s24 = sphi 0, %s22
      %s25 = sphi 0, %s23
      %s37 = sphi 0, %s39
      %s40 = sphi 0, %s37
      %s41 = sphi 0, %s40
      %s57 = sphi 0, %s41
      %s61 = sphi 0, %s61
      %s63 = sphi 0, %s61
      %s64 = sphi 0, %s63
      %s78 = sphi 0, %s64
      %s84 = sphi 0, %s86
      %s87 = sphi 0, %s84
      %s88 = sphi 0, %s87
      %s104 = sphi 0, %s88
      %s110 = sphi 0, %s112
      %s113 = sphi 0, %s110
      %s114 = sphi 0, %s113
      %s130 = sphi 0, %s114
    $region4: #{tpu_custom_call.1} parent=1 // loop_header_branch
      %16 = sbr.rel (%p14) target = $region8
    $region5: #{tpu_custom_call.1} parent=1 // loop_body
      %s18 = ssub.s32 %s13, 1
      %s19 = ssub.s32 %s13, 2
      %s26 = sadd.s32 1, %s21
      %p27 = scmp.ge.s32.totalorder %s26, 1
      %s28 = scalar_select %p27, 0, %s26
      %s29 = sadd.s32 1, %s20
      %s30 = scalar_select %p27, %s29, %s20
      %p31 = scmp.ge.s32.totalorder %s30, 2
      %s32 = scalar_select %p31, 0, %s30
      %s33 = ssub.s32 %s20, %s32
      %s34 = ssub.s32 %s21, %s28
      %s35 = sor.u32 %s33, %s34
      %p36 = scmp.eq.s32.totalorder %s35, 0
      %s38 = sadd.s32 %s37, 1
      %s39 = scalar_select %p36, %s37, %s38
      %p42 = pneg %p36
      %p43 = scmp.eq.s32.totalorder %s13, 1
      %p44 = por %p42, %p43
      %p45 = scmp.ne.s32.totalorder %s37, %s40
      %p46 = scmp.eq.s32.totalorder %s13, 0
      %p47 = por %p45, %p46
      %p48 = scmp.ne.s32.totalorder %s37, %s40
      %p49 = scmp.eq.s32.totalorder %s18, 1
      %p50 = por %p48, %p49
      %p51 = scmp.ne.s32.totalorder %s40, %s41
      %p52 = scmp.eq.s32.totalorder %s18, 0
      %p53 = por %p51, %p52
      %p54 = scmp.ne.s32.totalorder %s40, %s41
      %p55 = scmp.eq.s32.totalorder %s19, 1
      %p56 = por %p54, %p55
      %p58 = scmp.ne.s32.totalorder %s41, %s57
      %p59 = scmp.eq.s32.totalorder %s19, 0
      %p60 = por %p58, %p59
      %s62 = sadd.s32 %s61, 1
      %p65 = scmp.eq.s32.totalorder %s13, 1
      %p66 = scmp.ne.s32.totalorder %s61, %s63
      %p67 = scmp.eq.s32.totalorder %s13, 0
      %p68 = por %p66, %p67
      %p69 = scmp.ne.s32.totalorder %s61, %s63
      %p70 = scmp.eq.s32.totalorder %s18, 1
      %p71 = por %p69, %p70
      %p72 = scmp.ne.s32.totalorder %s63, %s64
      %p73 = scmp.eq.s32.totalorder %s18, 0
      %p74 = por %p72, %p73
      %p75 = scmp.ne.s32.totalorder %s63, %s64
      %p76 = scmp.eq.s32.totalorder %s19, 1
      %p77 = por %p75, %p76
      %p79 = scmp.ne.s32.totalorder %s64, %s78
      %p80 = scmp.eq.s32.totalorder %s19, 0
      %p81 = por %p79, %p80
      %s82 = ssub.s32 %s20, %s32
      %p83 = scmp.eq.s32.totalorder %s82, 0
      %s85 = sadd.s32 %s84, 1
      %s86 = scalar_select %p83, %s84, %s85
      %p89 = pneg %p83
      %p90 = scmp.eq.s32.totalorder %s13, 1
      %p91 = por %p89, %p90
      %p92 = scmp.ne.s32.totalorder %s84, %s87
      %p93 = scmp.eq.s32.totalorder %s13, 0
      %p94 = por %p92, %p93
      %p95 = scmp.ne.s32.totalorder %s84, %s87
      %p96 = scmp.eq.s32.totalorder %s18, 1
      %p97 = por %p95, %p96
      %p98 = scmp.ne.s32.totalorder %s87, %s88
      %p99 = scmp.eq.s32.totalorder %s18, 0
      %p100 = por %p98, %p99
      %p101 = scmp.ne.s32.totalorder %s87, %s88
      %p102 = scmp.eq.s32.totalorder %s19, 1
      %p103 = por %p101, %p102
      %p105 = scmp.ne.s32.totalorder %s88, %s104
      %p106 = scmp.eq.s32.totalorder %s19, 0
      %p107 = por %p105, %p106
      %s108 = ssub.s32 %s20, %s32
      %p109 = scmp.eq.s32.totalorder %s108, 0
      %s111 = sadd.s32 %s110, 1
      %s112 = scalar_select %p109, %s110, %s111
      %p115 = pneg %p109
      %p116 = scmp.eq.s32.totalorder %s13, 1
      %p117 = por %p115, %p116
      %p118 = scmp.ne.s32.totalorder %s110, %s113
      %p119 = scmp.eq.s32.totalorder %s13, 0
      %p120 = por %p118, %p119
      %p121 = scmp.ne.s32.totalorder %s110, %s113
      %p122 = scmp.eq.s32.totalorder %s18, 1
      %p123 = por %p121, %p122
      %p124 = scmp.ne.s32.totalorder %s113, %s114
      %p125 = scmp.eq.s32.totalorder %s18, 0
      %p126 = por %p124, %p125
      %p127 = scmp.ne.s32.totalorder %s113, %s114
      %p128 = scmp.eq.s32.totalorder %s19, 1
      %p129 = por %p127, %p128
      %p131 = scmp.ne.s32.totalorder %s114, %s130
      %p132 = scmp.eq.s32.totalorder %s19, 0
      %p133 = por %p131, %p132
      %p134 = scmp.le.s32.totalorder 1, %s13
      %p135 = scmp.lt.s32.totalorder %s13, 3
      %p136 = pnand %p134, %p135
      %p137 = pneg %p136
      // Predicated region
      $region9: #{tpu_custom_call.1} parent=5 // pred_check
        _
      $region10: #{tpu_custom_call.1} parent=5 // pred_check_branch
        %139 = sbr.rel (%p136) target = $region12
      $region11: #{tpu_custom_call.1} parent=5 // pred_region
        %s140 = ssub.s32 %s13, 1
        // Predicated region
        $region13: #{tpu_custom_call.1} parent=11 // pred_check
          %p141 = pneg %p74
        $region14: #{tpu_custom_call.1} parent=11 // pred_check_branch
          %143 = sbr.rel (%p141) target = $region16
        $region15: #{tpu_custom_call.1} parent=11 // pred_region
          _
        $region16: #{tpu_custom_call.1} parent=11 // pred_fallthru
          _
      $region12: #{tpu_custom_call.1} parent=5 // pred_fallthru
        _
      %p144 = scmp.lt.s32.totalorder %s13, 2
      // Predicated region
      $region17: #{tpu_custom_call.1} parent=5 // pred_check
        %p145 = pneg %p144
      $region18: #{tpu_custom_call.1} parent=5 // pred_check_branch
        %147 = sbr.rel (%p145) target = $region20
      $region19: #{tpu_custom_call.1} parent=5 // pred_region
        // Predicated region
        $region21: #{tpu_custom_call.1} parent=19 // pred_check
          %p148 = pneg %p47
        $region22: #{tpu_custom_call.1} parent=19 // pred_check_branch
          %150 = sbr.rel (%p148) target = $region24
        $region23: #{tpu_custom_call.1} parent=19 // pred_region
          %s151 = sand.u32 %s37, 1
          %s152 = scalar_lea.sflag [#allocation5], %s151
          %s153 = sand.u32 %s37, 1
          %s154 = smul.addr %s153, 8
          %s155 = scalar_lea.vmem [#allocation4], %s154
          %s156 = smul.u32 2, %s21
          %158 = vsyncadd %s152, 0
          %s159 = smul.addr %s20, 2
          %s160 = sadd.s32 %s156, %s159
          %s161 = smul.addr %s160, 4
          %s162 = scalar_lea.hbm %s0, %s161
          %s164 = sshll.u32 %s162, 4
          %s165 = int_to_ptr.hbm [resolvable:$true] %s164
          %s166 = sshll.u32 %s155, 4
          %s167 = int_to_ptr.vmem [resolvable:$true] %s166
          %169 = dma.hbm_to_vmem [thread:$0]  %s165, 128, %s167, %s152
        $region24: #{tpu_custom_call.1} parent=19 // pred_fallthru
          _
      $region20: #{tpu_custom_call.1} parent=5 // pred_fallthru
        _
      %p170 = scmp.le.s32.totalorder 1, %s13
      %p171 = scmp.lt.s32.totalorder %s13, 3
      %p172 = pnand %p170, %p171
      %p173 = pneg %p172
      // Predicated region
      $region25: #{tpu_custom_call.1} parent=5 // pred_check
        _
      $region26: #{tpu_custom_call.1} parent=5 // pred_check_branch
        %175 = sbr.rel (%p172) target = $region28
      $region27: #{tpu_custom_call.1} parent=5 // pred_region
        %s176 = ssub.s32 %s13, 1
        %s177 = sand.u32 %s40, 1
        %s178 = scalar_lea.sflag [#allocation5], %s177
        %s179 = sand.u32 %s40, 1
        %s180 = smul.addr %s179, 8
        %s181 = scalar_lea.vmem [#allocation4], %s180
        // Predicated region
        $region29: #{tpu_custom_call.1} parent=27 // pred_check
          %p182 = pneg %p53
        $region30: #{tpu_custom_call.1} parent=27 // pred_check_branch
          %184 = sbr.rel (%p182) target = $region32
        $region31: #{tpu_custom_call.1} parent=27 // pred_region
          %186 = dma.done %s178, 128
        $region32: #{tpu_custom_call.1} parent=27 // pred_fallthru
          _
        %s187 = sand.u32 %s40, 1
        %s188 = scalar_lea.sflag [#allocation5], %s187
        %s189 = sand.u32 %s40, 1
        %s190 = smul.addr %s189, 8
        %s191 = scalar_lea.vmem [#allocation4], %s190
        %p192 = pneg %p53
        %p193 = pneg %p50
        %p194 = pneg %p74
        %p195 = pneg %p71
        %p196 = pneg %p100
        %p197 = pneg %p97
        %p198 = scmp.lt.s32.totalorder %s22, 1
        %s199 = scalar_select %p198, %s22, 1
        %s200 = smul.addr %s199, 4
        %s201 = scalar_lea.vmem %s2, %s200
        %p202 = pneg %p126
        %p203 = pneg %p123
        %p204 = scmp.lt.s32.totalorder %s22, 1
        %s205 = scalar_select %p204, %s22, 1
        %s206 = smul.addr %s205, 4
        %s207 = scalar_lea.vmem %s3, %s206
        %s208 = smul.u32 2, %s23
        %p209 = scmp.lt.s32.totalorder %s22, 1
        %s210 = scalar_select %p209, %s22, 1
        %s211 = smul.addr %s210, 4
        %s212 = scalar_lea.vmem %s2, %s211
        %p213 = scmp.lt.s32.totalorder %s22, 1
        %s214 = scalar_select %p213, %s22, 1
        %s215 = smul.addr %s214, 4
        %s216 = scalar_lea.vmem %s3, %s215
        %p217 = scmp.eq.s32.totalorder %s23, 0
        // Predicated region
        $region33: #{tpu_custom_call.1} parent=27 // pred_check
          %p218 = pneg %p217
        $region34: #{tpu_custom_call.1} parent=27 // pred_check_branch
          %220 = sbr.rel (%p218) target = $region36
        $region35: #{tpu_custom_call.1} parent=27 // pred_region
          %221 = vst [vmem:[#allocation2] sm:$0xff] 0.0
          %222 = vst [vmem:[#allocation3] sm:$0xff] 0.0
        $region36: #{tpu_custom_call.1} parent=27 // pred_fallthru
          _
        %v223 = vld [vmem:[%s181] sm:$0xff]
        %v224 = vld [vmem:[%s1] sm:$0xf]
        %226 = vset.pattern.permute.xlu0 0
        %227 = vperm.xlu0 %226, %v224
        %v228 = vpop.permute.xlu0 %227
        %v230 = vunpack.c.l.s4 839922192
        %v231 = vunpack.c.0.s8 %v230
        %v232 = vperm.slane %v228, %v231
        %v234 = vsub.f32 %v223, %v232
        %v235 = vld [vmem:[#allocation2] sm:$0xff]
        %v236 = vadd.f32 %v235, %v223
        %237 = vst [vmem:[#allocation2] sm:$0xff] %v236
        %v238 = vld [vmem:[#allocation3] sm:$0xff]
        %v239 = vmul.f32 %v234, %v234
        %v240 = vadd.f32 %v238, %v239
        %241 = vst [vmem:[#allocation3] sm:$0xff] %v240
        // Predicated region
        $region37: #{tpu_custom_call.1} parent=27 // pred_check
          %p242 = pneg %p217
        $region38: #{tpu_custom_call.1} parent=27 // pred_check_branch
          %244 = sbr.rel (%p242) target = $region40
        $region39: #{tpu_custom_call.1} parent=27 // pred_region
          %v245 = vld [vmem:[#allocation2] sm:$0xff]
          %247 = vst [vmem:[#allocation1] ss:$2 sm:$0xff] %v245
          %v248 = vld.sshfl [vmem:[#allocation1] sm:$0xff pattern:$0x75316420]
          %v249 = vld.sshfl [vmem:[#allocation1 + $0x8] sm:$0xff pattern:$0x75316420]
          %vm252 = vcmask 1043456
          %v253 = vsel %vm252, %v248, 0.0
          %v254 = vsel %vm252, %v249, 0.0
          %v255 = vadd.f32 %v253, %v254
          %256 = vadd.xlane.f32.xlu0 %v255
          %v257 = vpop.xlane.xlu0 %256
          %vm258 = vcmask 3072
          %259 = vst.msk [vmem:[%s212] sm:$0xf] %vm258, %v257
          %v260 = vld [vmem:[#allocation3] sm:$0xff]
          %262 = vst [vmem:[#allocation1] ss:$2 sm:$0xff] %v260
          %v263 = vld.sshfl [vmem:[#allocation1] sm:$0xff pattern:$0x75316420]
          %v264 = vld.sshfl [vmem:[#allocation1 + $0x8] sm:$0xff pattern:$0x75316420]
          %v267 = vsel %vm252, %v263, 0.0
          %v268 = vsel %vm252, %v264, 0.0
          %v269 = vadd.f32 %v267, %v268
          %270 = vadd.xlane.f32.xlu0 %v269
          %v271 = vpop.xlane.xlu0 %270
          %272 = vst.msk [vmem:[%s216] sm:$0xf] %vm258, %v271
        $region40: #{tpu_custom_call.1} parent=27 // pred_fallthru
          _
        %p273 = scmp.lt.s32.totalorder %s22, 1
        %s274 = scalar_select %p273, %s22, 1
        %s275 = smul.addr %s274, 4
        %s276 = scalar_lea.vmem %s2, %s275
        %p277 = scmp.lt.s32.totalorder %s22, 1
        %s278 = scalar_select %p277, %s22, 1
        %s279 = smul.addr %s278, 4
        %s280 = scalar_lea.vmem %s3, %s279
        // Predicated region
        $region41: #{tpu_custom_call.1} parent=27 // pred_check
          %p281 = pneg %p97
        $region42: #{tpu_custom_call.1} parent=27 // pred_check_branch
          %283 = sbr.rel (%p281) target = $region44
        $region43: #{tpu_custom_call.1} parent=27 // pred_region
          _
        $region44: #{tpu_custom_call.1} parent=27 // pred_fallthru
          _
        // Predicated region
        $region45: #{tpu_custom_call.1} parent=27 // pred_check
          %p284 = pneg %p123
        $region46: #{tpu_custom_call.1} parent=27 // pred_check_branch
          %286 = sbr.rel (%p284) target = $region48
        $region47: #{tpu_custom_call.1} parent=27 // pred_region
          _
        $region48: #{tpu_custom_call.1} parent=27 // pred_fallthru
          _
      $region28: #{tpu_custom_call.1} parent=5 // pred_fallthru
        _
      %p287 = scmp.le.s32.totalorder 2, %s13
      // Predicated region
      $region49: #{tpu_custom_call.1} parent=5 // pred_check
        %p288 = pneg %p287
      $region50: #{tpu_custom_call.1} parent=5 // pred_check_branch
        %290 = sbr.rel (%p288) target = $region52
      $region51: #{tpu_custom_call.1} parent=5 // pred_region
        %s291 = ssub.s32 %s13, 2
        // Predicated region
        $region53: #{tpu_custom_call.1} parent=51 // pred_check
          %p292 = pneg %p103
        $region54: #{tpu_custom_call.1} parent=51 // pred_check_branch
          %294 = sbr.rel (%p292) target = $region56
        $region55: #{tpu_custom_call.1} parent=51 // pred_region
          %p295 = scmp.lt.s32.totalorder %s24, 1
          %s296 = scalar_select %p295, %s24, 1
          %s297 = smul.addr %s296, 4
          %s298 = scalar_lea.vmem %s2, %s297
        $region56: #{tpu_custom_call.1} parent=51 // pred_fallthru
          _
        // Predicated region
        $region57: #{tpu_custom_call.1} parent=51 // pred_check
          %p299 = pneg %p129
        $region58: #{tpu_custom_call.1} parent=51 // pred_check_branch
          %301 = sbr.rel (%p299) target = $region60
        $region59: #{tpu_custom_call.1} parent=51 // pred_region
          %p302 = scmp.lt.s32.totalorder %s24, 1
          %s303 = scalar_select %p302, %s24, 1
          %s304 = smul.addr %s303, 4
          %s305 = scalar_lea.vmem %s3, %s304
        $region60: #{tpu_custom_call.1} parent=51 // pred_fallthru
          _
      $region52: #{tpu_custom_call.1} parent=5 // pred_fallthru
        _
    $region6: #{tpu_custom_call.1} parent=1 // loop_footer
      %s17 = sadd.s32 1, %s13
    $region7: #{tpu_custom_call.1} parent=1 // loop_footer_branch
      %12 = sbr.rel target = $region3
    $region8: #{tpu_custom_call.1} parent=1 // loop_exit
      _
    %306 = vsyncpa [#allocation5], 1
    %s307 = scalar_lea.sflag [#allocation5], 1
    %308 = vsyncpa %s307, 1

</llo_original>
